<compile_context>
chip_gen: v7x
topology: tpu7x:2x2x1
jax: 0.10.0
libtpu: 0.0.40
codegen_flags: <defaults>
</compile_context>

<pallas_src>
import functools

import jax
import jax.numpy as jnp
from jax.experimental import pallas as pl
from jax.experimental.pallas import tpu as pltpu


# --------------------------------------------------------------------------
# Generation-aware tiling / VMEM helpers
# --------------------------------------------------------------------------

def _round_up(x, m):
    return (x + m - 1) // m * m


@functools.lru_cache(maxsize=None)
def _vmem_limit():
    """~75% of physical VMEM (96 MiB on v5e/v6e's 128 MiB, 48 MiB on v7x's 64 MiB)."""
    try:
        cap = int(pltpu.get_tpu_info().vmem_capacity_bytes)
        return max(32 * 1024 * 1024, min((cap * 3) // 4, 100 * 1024 * 1024))
    except Exception:  # pragma: no cover - conservative fallback
        return 48 * 1024 * 1024


def _cparams(semantics):
    return pltpu.CompilerParams(dimension_semantics=semantics,
                                vmem_limit_bytes=_vmem_limit())


def _row_tile(M, max_rows=512):
    """Row tile; always expose >=2 grid steps so both v7x TensorCores get work."""
    tm = min(max_rows, M)
    if M > 8 and pl.cdiv(M, tm) < 2:
        tm = _round_up(pl.cdiv(M, 2), 8)
    return tm


def _col_tile(N):
    """Lane-dense output-column tile (N is always a multiple of 128 here)."""
    for t in (512, 384, 256, 128):
        if N % t == 0:
            return t
    return N


def _chunk_size(S, Dh):
    """Attention chunk; large chunks only pay off when Dh is large."""
    cap = 256 if Dh >= 128 else 128
    for c in (cap, cap // 2, 64, 32, 16, 8):
        if c <= S and S % c == 0:
            return c
    return S


# --------------------------------------------------------------------------
# Fused row-wise kernels
# --------------------------------------------------------------------------

def _ln_matmul_kernel(x_ref, g_ref, b_ref, w_ref, bias_ref, o_ref):
    """o = LayerNorm(x) @ w + bias   (LN fused as matmul prologue, N-tiled)."""
    x = x_ref[...].astype(jnp.float32)
    mean = jnp.mean(x, axis=-1, keepdims=True)
    var = jnp.mean(jnp.square(x - mean), axis=-1, keepdims=True)
    xn = (x - mean) * jax.lax.rsqrt(var + 1e-5)
    xn = xn * g_ref[...] + b_ref[...]
    acc = jnp.dot(xn.astype(jnp.bfloat16), w_ref[...],
                  preferred_element_type=jnp.float32)
    o_ref[...] = (acc + bias_ref[...]).astype(o_ref.dtype)


def ln_matmul_bias(x, gamma, beta, w, b):
    M, D = x.shape
    N = w.shape[1]
    tm = _row_tile(M)
    tn = _col_tile(N)
    return pl.pallas_call(
        _ln_matmul_kernel,
        out_shape=jax.ShapeDtypeStruct((M, N), jnp.float32),
        grid=(pl.cdiv(M, tm), pl.cdiv(N, tn)),
        in_specs=[
            pl.BlockSpec((tm, D), lambda i, j: (i, 0)),
            pl.BlockSpec((1, D), lambda i, j: (0, 0)),
            pl.BlockSpec((1, D), lambda i, j: (0, 0)),
            pl.BlockSpec((D, tn), lambda i, j: (0, j)),
            pl.BlockSpec((1, tn), lambda i, j: (0, j)),
        ],
        out_specs=pl.BlockSpec((tm, tn), lambda i, j: (i, j)),
        compiler_params=_cparams(("parallel", "parallel")),
    )(x, gamma.reshape(1, D), beta.reshape(1, D), w, b.reshape(1, N))


def _ffn_kernel(x_ref, g_ref, b_ref, w1_ref, b1_ref, w2_ref, b2_ref, o_ref):
    """o = x + GELU(LN(x) @ w1 + b1) @ w2 + b2   — whole FFN block in one kernel."""
    x = x_ref[...].astype(jnp.float32)
    mean = jnp.mean(x, axis=-1, keepdims=True)
    var = jnp.mean(jnp.square(x - mean), axis=-1, keepdims=True)
    xn = (x - mean) * jax.lax.rsqrt(var + 1e-5)
    xn = xn * g_ref[...] + b_ref[...]
    h1 = jnp.dot(xn.astype(jnp.bfloat16), w1_ref[...],
                 preferred_element_type=jnp.float32) + b1_ref[...]
    # TODO(synk): tanh-approx GELU; PyTorch's default nn.GELU uses the exact erf formulation.
    h1 = jax.nn.gelu(h1, approximate=True)
    h2 = jnp.dot(h1.astype(jnp.bfloat16), w2_ref[...],
                 preferred_element_type=jnp.float32) + b2_ref[...]
    o_ref[...] = (x + h2).astype(o_ref.dtype)


def ffn_block(x, gamma, beta, w1, b1, w2, b2):
    # TODO(synk): for very large D on v7x (64 MiB VMEM) add a hidden-dim grid axis with an
    # accumulator instead of holding full w1/w2 tiles; fine at the sizes exercised here.
    M, D = x.shape
    Hd = w1.shape[1]
    tm = _row_tile(M)
    return pl.pallas_call(
        _ffn_kernel,
        out_shape=jax.ShapeDtypeStruct((M, D), jnp.float32),
        grid=(pl.cdiv(M, tm),),
        in_specs=[
            pl.BlockSpec((tm, D), lambda i: (i, 0)),
            pl.BlockSpec((1, D), lambda i: (0, 0)),
            pl.BlockSpec((1, D), lambda i: (0, 0)),
            pl.BlockSpec((D, Hd), lambda i: (0, 0)),
            pl.BlockSpec((1, Hd), lambda i: (0, 0)),
            pl.BlockSpec((Hd, D), lambda i: (0, 0)),
            pl.BlockSpec((1, D), lambda i: (0, 0)),
        ],
        out_specs=pl.BlockSpec((tm, D), lambda i: (i, 0)),
        compiler_params=_cparams(("parallel",)),
    )(x, gamma.reshape(1, D), beta.reshape(1, D),
      w1, b1.reshape(1, Hd), w2, b2.reshape(1, D))


# --------------------------------------------------------------------------
# Chunked causal linear attention + fused output projection/residual
#   grid = (B, S//C, H)  —  B parallel, chunk axis carries per-head KV state,
#   head axis accumulates the output projection into a resident (C, D) block.
# --------------------------------------------------------------------------

def _linear_attn_kernel(qkv_ref, wo_ref, bo_ref, res_ref, o_ref,
                        kv_ref, z_ref, acc_ref, *, Dh, C):
    c = pl.program_id(1)
    h = pl.program_id(2)

    @pl.when(c == 0)
    def _():
        kv_ref[h] = jnp.zeros((Dh, Dh), jnp.float32)
        z_ref[h] = jnp.zeros((1, Dh), jnp.float32)

    blk = qkv_ref[0].astype(jnp.float32)          # (C, W)  per-head [q | k | v | pad]
    q = blk[:, 0:Dh]
    k = blk[:, Dh:2 * Dh]
    v = blk[:, 2 * Dh:3 * Dh]

    # feature map phi(x) = elu(x) + 1
    phi_q = jnp.where(q > 0, q + 1.0, jnp.exp(q))
    phi_k = jnp.where(k > 0, k + 1.0, jnp.exp(k))

    # intra-chunk causal part (bf16 operands, f32 accumulation)
    s = jax.lax.dot_general(
        phi_q.astype(jnp.bfloat16), phi_k.astype(jnp.bfloat16),
        (((1,), (1,)), ((), ())), preferred_element_type=jnp.float32)   # (C, C)
    row = jax.lax.broadcasted_iota(jnp.int32, (C, C), 0)
    col = jax.lax.broadcasted_iota(jnp.int32, (C, C), 1)
    s = jnp.where(col <= row, s, 0.0)
    num = jnp.dot(s.astype(jnp.bfloat16), v.astype(jnp.bfloat16),
                  preferred_element_type=jnp.float32)                   # (C, Dh)
    den = jnp.sum(s, axis=-1, keepdims=True)                            # (C, 1)

    # inter-chunk contribution from the carried per-head state
    kv_state = kv_ref[h]                                                # (Dh, Dh)
    z_state = z_ref[h]                                                  # (1, Dh)
    num = num + jnp.dot(phi_q.astype(jnp.bfloat16), kv_state.astype(jnp.bfloat16),
                        preferred_element_type=jnp.float32)
    den = den + jnp.sum(phi_q * z_state, axis=-1, keepdims=True)

    out_h = num * pl.reciprocal(den + 1e-6, approx=True)                # (C, Dh)

    # update running state for the next chunk (f32 accumulators, bf16 MXU operands)
    kv_ref[h] = kv_state + jax.lax.dot_general(
        phi_k.astype(jnp.bfloat16), v.astype(jnp.bfloat16),
        (((0,), (0,)), ((), ())), preferred_element_type=jnp.float32)
    z_ref[h] = z_state + jnp.sum(phi_k, axis=0, keepdims=True)

    # fused output projection + bias + residual, accumulated across the head axis;
    # single lane-dense (C, D) store per chunk.
    @pl.when(h == 0)
    def _():
        acc_ref[...] = res_ref[0].astype(jnp.float32) + bo_ref[...]

    acc_ref[...] += jnp.dot(out_h.astype(jnp.bfloat16), wo_ref[0],
                            preferred_element_type=jnp.float32)

    @pl.when(h == pl.num_programs(2) - 1)
    def _():
        o_ref[0] = acc_ref[...].astype(o_ref.dtype)


def linear_attention_proj(qkv, wo_h, bo, res, *, B, S, D, H, Dh, W, C):
    """qkv: (B, S, H*W) head-major packed projection; returns residual + attn @ wo + bo."""
    kern = functools.partial(_linear_attn_kernel, Dh=Dh, C=C)
    return pl.pallas_call(
        kern,
        out_shape=jax.ShapeDtypeStruct((B, S, D), jnp.float32),
        grid=(B, S // C, H),
        in_specs=[
            pl.BlockSpec((1, C, W), lambda b, c, h: (b, c, h)),
            pl.BlockSpec((1, Dh, D), lambda b, c, h: (h, 0, 0)),
            pl.BlockSpec((1, D), lambda b, c, h: (0, 0)),
            pl.BlockSpec((1, C, D), lambda b, c, h: (b, c, 0)),
        ],
        out_specs=pl.BlockSpec((1, C, D), lambda b, c, h: (b, c, 0)),
        scratch_shapes=[
            pltpu.VMEM((H, Dh, Dh), jnp.float32),   # running phi(k)^T v per head
            pltpu.VMEM((H, 1, Dh), jnp.float32),    # running sum phi(k) per head
            pltpu.VMEM((C, D), jnp.float32),        # output-projection accumulator
        ],
        compiler_params=_cparams(("parallel", "arbitrary", "arbitrary")),
    )(qkv, wo_h, bo.reshape(1, D), res)


# --------------------------------------------------------------------------
# Parameter init (deterministic, synthetic) + one-time packing
# --------------------------------------------------------------------------

def init_params(key, vocab_size, dim, depth, heads, max_seq_len):
    def normal(k, shape):
        return 0.02 * jax.random.normal(k, shape, dtype=jnp.float32)

    keys = jax.random.split(key, 3 + depth)
    params = {
        "heads": heads,
        "tok_emb": normal(keys[0], (vocab_size, dim)),
        "pos_emb": normal(keys[1], (max_seq_len, dim)),
        "lnf_g": jnp.ones((dim,), jnp.float32),
        "lnf_b": jnp.zeros((dim,), jnp.float32),
        "w_out": normal(keys[2], (dim, vocab_size)),
        "b_out": jnp.zeros((vocab_size,), jnp.float32),
        "layers": [],
    }
    hidden = 4 * dim
    for d in range(depth):
        lk = jax.random.split(keys[3 + d], 6)
        params["layers"].append({
            "ln1_g": jnp.ones((dim,), jnp.float32),
            "ln1_b": jnp.zeros((dim,), jnp.float32),
            "wq": normal(lk[0], (dim, dim)), "bq": jnp.zeros((dim,), jnp.float32),
            "wk": normal(lk[1], (dim, dim)), "bk": jnp.zeros((dim,), jnp.float32),
            "wv": normal(lk[2], (dim, dim)), "bv": jnp.zeros((dim,), jnp.float32),
            "wo": normal(lk[3], (dim, dim)), "bo": jnp.zeros((dim,), jnp.float32),
            "ln2_g": jnp.ones((dim,), jnp.float32),
            "ln2_b": jnp.zeros((dim,), jnp.float32),
            "w1": normal(lk[4], (dim, hidden)), "b1": jnp.zeros((hidden,), jnp.float32),
            "w2": normal(lk[5], (hidden, dim)), "b2": jnp.zeros((dim,), jnp.float32),
        })
    return params


def prepack_params(params):
    """One-time weight packing: head-major padded QKV, bf16 matmul weights, padded vocab head."""
    D = params["tok_emb"].shape[1]
    H = params["heads"]
    Dh = D // H
    W = _round_up(3 * Dh, 128)          # per-head [q|k|v|pad] lane-aligned column block
    vocab = params["w_out"].shape[1]
    vpad = _round_up(vocab, 128)

    packed = {
        "heads": H, "dim": D, "head_dim": Dh, "qkv_block": W,
        "vocab": vocab,
        "tok_emb": params["tok_emb"],
        "pos_emb": params["pos_emb"],
        "lnf_g": params["lnf_g"], "lnf_b": params["lnf_b"],
        "w_out": jnp.pad(params["w_out"], ((0, 0), (0, vpad - vocab))).astype(jnp.bfloat16),
        "b_out": jnp.pad(params["b_out"], (0, vpad - vocab)),
        "layers": [],
    }
    for layer in params["layers"]:
        wq = layer["wq"].reshape(D, H, Dh)
        wk = layer["wk"].reshape(D, H, Dh)
        wv = layer["wv"].reshape(D, H, Dh)
        blk = jnp.concatenate([wq, wk, wv], axis=-1)              # (D, H, 3*Dh)
        blk = jnp.pad(blk, ((0, 0), (0, 0), (0, W - 3 * Dh)))     # (D, H, W)
        wqkv = blk.reshape(D, H * W).astype(jnp.bfloat16)

        bq = layer["bq"].reshape(H, Dh)
        bk = layer["bk"].reshape(H, Dh)
        bv = layer["bv"].reshape(H, Dh)
        bblk = jnp.concatenate([bq, bk, bv], axis=-1)             # (H, 3*Dh)
        bqkv = jnp.pad(bblk, ((0, 0), (0, W - 3 * Dh))).reshape(H * W)

        packed["layers"].append({
            "ln1_g": layer["ln1_g"], "ln1_b": layer["ln1_b"],
            "wqkv": wqkv, "bqkv": bqkv,
            "wo_h": layer["wo"].reshape(H, Dh, D).astype(jnp.bfloat16),
            "bo": layer["bo"],
            "ln2_g": layer["ln2_g"], "ln2_b": layer["ln2_b"],
            "w1": layer["w1"].astype(jnp.bfloat16), "b1": layer["b1"],
            "w2": layer["w2"].astype(jnp.bfloat16), "b2": layer["b2"],
        })
    return packed


# --------------------------------------------------------------------------
# Forward pass
# --------------------------------------------------------------------------

def linear_transformer_forward(packed, x_ids, mask=None):
    # TODO(synk): only the built-in causal mask is supported; an explicit `mask` is not applied.
    assert mask is None, "only mask=None (pure causal) is supported"
    B, S = x_ids.shape
    D = packed["dim"]
    H = packed["heads"]
    Dh = packed["head_dim"]
    W = packed["qkv_block"]
    vocab = packed["vocab"]
    C = _chunk_size(S, Dh)

    # embeddings (gather is glue; plain JAX)
    h = jnp.take(packed["tok_emb"], x_ids, axis=0) + packed["pos_emb"][:S][None, :, :]
    h = h.reshape(B * S, D)          # f32 residual stream

    for layer in packed["layers"]:
        # fused LN1 + head-major QKV projection (lane-padded, one pallas_call)
        qkv = ln_matmul_bias(h, layer["ln1_g"], layer["ln1_b"],
                             layer["wqkv"], layer["bqkv"])            # (M, H*W)

        # chunked causal linear attention + fused out-projection + residual
        h = linear_attention_proj(
            qkv.reshape(B, S, H * W), layer["wo_h"], layer["bo"], h.reshape(B, S, D),
            B=B, S=S, D=D, H=H, Dh=Dh, W=W, C=C).reshape(B * S, D)

        # fused FFN block (LN2 -> w1 -> GELU -> w2 -> +residual)
        h = ffn_block(h, layer["ln2_g"], layer["ln2_b"],
                      layer["w1"], layer["b1"], layer["w2"], layer["b2"])

    # final LN + vocab projection (lane-dense, N-tiled)
    logits = ln_matmul_bias(h, packed["lnf_g"], packed["lnf_b"],
                            packed["w_out"], packed["b_out"])          # (M, vpad)
    return logits[:, :vocab].reshape(B, S, vocab)


# --------------------------------------------------------------------------
# Main
# --------------------------------------------------------------------------

if __name__ == "__main__":
    vocab_size = 64
    dim = 32
    depth = 2
    heads = 8
    max_seq_len = 1024

    batch = 2
    seq = 8

    key = jax.random.PRNGKey(0)
    pkey, xkey = jax.random.split(key)
    params = init_params(pkey, vocab_size, dim, depth, heads, max_seq_len)
    packed = prepack_params(params)

    x_ids = jax.random.randint(xkey, (batch, seq), 0, vocab_size, dtype=jnp.int32)

    logits = linear_transformer_forward(packed, x_ids)
    logits = jax.block_until_ready(logits)

    assert logits.shape == (batch, seq, vocab_size), logits.shape
    assert logits.dtype == jnp.float32
    assert bool(jnp.all(jnp.isfinite(logits)))
    print("KERNEL_OK")
</pallas_src>

<mosaic_0001>
module attributes {stable_mosaic.version = 11 : i64} {
  func.func @_ln_matmul_kernel(%arg0: i32, %arg1: i32, %arg2: memref<8x32xf32, #tpu.memory_space<vmem>>, %arg3: memref<1x32xf32, #tpu.memory_space<vmem>>, %arg4: memref<1x32xf32, #tpu.memory_space<vmem>>, %arg5: memref<32x512xbf16, #tpu.memory_space<vmem>>, %arg6: memref<1x512xf32, #tpu.memory_space<vmem>>, %arg7: memref<8x512xf32, #tpu.memory_space<vmem>>) attributes {dimension_semantics = [#tpu.dimension_semantics<parallel>, #tpu.dimension_semantics<parallel>], iteration_bounds = array<i64: 2, 2>, scalar_prefetch = 0 : i64, scratch_operands = 0 : i64, tpu.core_type = #tpu.core_type<tc>, window_params = [{transform_indices = @transform_0, window_bounds = array<i64: 8, 32>}, {pipeline_mode = #tpu.pipeline_mode<synchronous>, transform_indices = @transform_1, window_bounds = array<i64: 1, 32>}, {pipeline_mode = #tpu.pipeline_mode<synchronous>, transform_indices = @transform_2, window_bounds = array<i64: 1, 32>}, {transform_indices = @transform_3, window_bounds = array<i64: 32, 512>}, {transform_indices = @transform_4, window_bounds = array<i64: 1, 512>}, {transform_indices = @transform_5, window_bounds = array<i64: 8, 512>}]} {
    %c0 = arith.constant 0 : index
    %c0_0 = arith.constant 0 : index
    %0 = vector.load %arg2[%c0, %c0_0] : memref<8x32xf32, #tpu.memory_space<vmem>>, vector<8x32xf32>
    %cst = arith.constant dense<0.000000e+00> : vector<8xf32>
    %1 = vector.multi_reduction <add>, %0, %cst [1] : vector<8x32xf32> to vector<8xf32>
    %2 = vector.shape_cast %1 : vector<8xf32> to vector<8x1xf32>
    %cst_1 = arith.constant 3.200000e+01 : f32
    %3 = vector.broadcast %cst_1 : f32 to vector<8x1xf32>
    %4 = arith.divf %2, %3 : vector<8x1xf32>
    %5 = vector.broadcast %4 : vector<8x1xf32> to vector<8x32xf32>
    %6 = arith.subf %0, %5 : vector<8x32xf32>
    %7 = arith.mulf %6, %6 : vector<8x32xf32>
    %cst_2 = arith.constant dense<0.000000e+00> : vector<8xf32>
    %8 = vector.multi_reduction <add>, %7, %cst_2 [1] : vector<8x32xf32> to vector<8xf32>
    %9 = vector.shape_cast %8 : vector<8xf32> to vector<8x1xf32>
    %cst_3 = arith.constant 3.200000e+01 : f32
    %10 = vector.broadcast %cst_3 : f32 to vector<8x1xf32>
    %11 = arith.divf %9, %10 : vector<8x1xf32>
    %12 = vector.broadcast %4 : vector<8x1xf32> to vector<8x32xf32>
    %13 = arith.subf %0, %12 : vector<8x32xf32>
    %cst_4 = arith.constant 9.99999974E-6 : f32
    %14 = vector.broadcast %cst_4 : f32 to vector<8x1xf32>
    %15 = arith.addf %11, %14 : vector<8x1xf32>
    %16 = math.rsqrt %15 : vector<8x1xf32>
    %17 = vector.broadcast %16 : vector<8x1xf32> to vector<8x32xf32>
    %18 = arith.mulf %13, %17 : vector<8x32xf32>
    %c0_5 = arith.constant 0 : index
    %c0_6 = arith.constant 0 : index
    %19 = vector.load %arg3[%c0_5, %c0_6] : memref<1x32xf32, #tpu.memory_space<vmem>>, vector<1x32xf32>
    %20 = vector.broadcast %19 : vector<1x32xf32> to vector<8x32xf32>
    %21 = arith.mulf %18, %20 : vector<8x32xf32>
    %c0_7 = arith.constant 0 : index
    %c0_8 = arith.constant 0 : index
    %22 = vector.load %arg4[%c0_7, %c0_8] : memref<1x32xf32, #tpu.memory_space<vmem>>, vector<1x32xf32>
    %23 = vector.broadcast %22 : vector<1x32xf32> to vector<8x32xf32>
    %24 = arith.addf %21, %23 : vector<8x32xf32>
    %25 = arith.truncf %24 : vector<8x32xf32> to vector<8x32xbf16>
    %c0_9 = arith.constant 0 : index
    %c0_10 = arith.constant 0 : index
    %26 = vector.load %arg5[%c0_9, %c0_10] : memref<32x512xbf16, #tpu.memory_space<vmem>>, vector<32x512xbf16>
    %cst_11 = arith.constant dense<0.000000e+00> : vector<8x512xf32>
    %27 = tpu.matmul %25, %26, %cst_11 {dimension_numbers = #tpu.dot_dimension_numbers<[1], [0], [0], [1], [0, 0, 1, 1], [], []>} : vector<8x32xbf16>, vector<32x512xbf16>, vector<8x512xf32> -> vector<8x512xf32>
    %c0_12 = arith.constant 0 : index
    %c0_13 = arith.constant 0 : index
    %28 = vector.load %arg6[%c0_12, %c0_13] : memref<1x512xf32, #tpu.memory_space<vmem>>, vector<1x512xf32>
    %29 = vector.broadcast %28 : vector<1x512xf32> to vector<8x512xf32>
    %30 = arith.addf %27, %29 : vector<8x512xf32>
    %c0_14 = arith.constant 0 : index
    %c0_15 = arith.constant 0 : index
    %31 = vector.load %arg7[%c0_14, %c0_15] : memref<8x512xf32, #tpu.memory_space<vmem>>, vector<8x512xf32>
    tpu.vector_store %arg7[%c0_14, %c0_15], %30 {strides = array<i32>} : memref<8x512xf32, #tpu.memory_space<vmem>>, vector<8x512xf32>,
    return
  }
  func.func @transform_0(%arg0: i32, %arg1: i32) -> (i32, i32) {
    %c0_i32 = arith.constant 0 : i32
    %c0_i32_0 = arith.constant 0 : i32
    return %arg0, %c0_i32 : i32, i32
  }
  func.func @transform_1(%arg0: i32, %arg1: i32) -> (i32, i32) {
    %c0_i32 = arith.constant 0 : i32
    %c0_i32_0 = arith.constant 0 : i32
    %c0_i32_1 = arith.constant 0 : i32
    return %c0_i32, %c0_i32_0 : i32, i32
  }
  func.func @transform_2(%arg0: i32, %arg1: i32) -> (i32, i32) {
    %c0_i32 = arith.constant 0 : i32
    %c0_i32_0 = arith.constant 0 : i32
    %c0_i32_1 = arith.constant 0 : i32
    return %c0_i32, %c0_i32_0 : i32, i32
  }
  func.func @transform_3(%arg0: i32, %arg1: i32) -> (i32, i32) {
    %c0_i32 = arith.constant 0 : i32
    %c0_i32_0 = arith.constant 0 : i32
    return %c0_i32, %arg1 : i32, i32
  }
  func.func @transform_4(%arg0: i32, %arg1: i32) -> (i32, i32) {
    %c0_i32 = arith.constant 0 : i32
    %c0_i32_0 = arith.constant 0 : i32
    return %c0_i32, %arg1 : i32, i32
  }
  func.func @transform_5(%arg0: i32, %arg1: i32) -> (i32, i32) {
    %c0_i32 = arith.constant 0 : i32
    return %arg0, %arg1 : i32, i32
  }
}

</mosaic_0001>

<llo_original>
// kernel: tpu_custom_call.1
$region0: #{tpu_custom_call.1}
  #allocation0 [shape = 'u32[]', space=smem, size = 0x4, offset = 0x4, fixed_abs, tag = 'smem constant byte address 0x4 - core index']
  #allocation1 [shape = 'u32[144,128]{1,0:T(1,128)}', space=vmem, size = 0x12000, scoped, tag = 'internal scratch']
  %s0 = inlined_call_operand.hbm [shape: f32[16,32], index: 0, kind: input, shape index: {}]
  %s1 = inlined_call_operand.vmem [shape: f32[1,32], index: 1, kind: input, shape index: {}]
  %s2 = inlined_call_operand.vmem [shape: f32[1,32], index: 2, kind: input, shape index: {}]
  %s3 = inlined_call_operand.hbm [shape: bf16[32,1024], index: 3, kind: input, shape index: {}]
  %s4 = inlined_call_operand.vmem [shape: f32[1,1024], index: 4, kind: input, shape index: {}]
  %s5 = inlined_call_operand.hbm [shape: f32[16,1024], index: 5, kind: output, shape index: {}]
  %s6 = sld [smem:[#allocation0]]
  $region61: #{tpu_custom_call.1} parent=0
    _
  %s8 = ssub.s32 1, %s6
  %s9 = scalar_select 0, %s8, %s6
  $region1: #{tpu_custom_call.1} parent=0
    #allocation2 [shape = 'u8[8192]{0}', space=vmem, size = 0x2000, scoped, tag = 'input window, operand 0']
    #allocation3 [shape = 's32[2]{0}', space=sflag, size = 0x8, scoped, tag = 'scoped memory for tpu_custom_call.1']
    #allocation4 [shape = 's32[2]{0}', space=sflag, size = 0x8, scoped, tag = 'scoped memory for tpu_custom_call.1']
    #allocation5 [shape = 'u8[65536]{0}', space=vmem, size = 0x10000, scoped, tag = 'input window, operand 3']
    #allocation6 [shape = 's32[2]{0}', space=sflag, size = 0x8, scoped, tag = 'scoped memory for tpu_custom_call.1']
    #allocation7 [shape = 'u8[32768]{0}', space=vmem, size = 0x8000, scoped, tag = 'output window, operand 0']
    %10 = vsyncpa [#allocation3], 0
    %s11 = scalar_lea.sflag [#allocation3], 1
    %12 = vsyncpa %s11, 0
    %13 = vsyncpa [#allocation6], 0
    %s14 = scalar_lea.sflag [#allocation6], 1
    %15 = vsyncpa %s14, 0
    %16 = vsyncpa [#allocation4], 0
    %s17 = scalar_lea.sflag [#allocation4], 1
    %18 = vsyncpa %s17, 0
    loop: start=0, step=1, limit=6
    $region2: #{tpu_custom_call.1} parent=1 // loop_pre_header
      _
    $region3: #{tpu_custom_call.1} parent=1 // loop_header
      %s20 = sphi 0, %s24
      %p21 = scmp.ge.s32.totalorder %s20, 6
      %s27 = sphi 0, %s39
      %s28 = sphi 0, %s35
      %s29 = sphi 0, %s27
      %s30 = sphi 0, %s28
      %s31 = sphi 0, %s29
      %s32 = sphi 0, %s30
      %s42 = sphi 0, %s44
      %s45 = sphi 0, %s42
      %s46 = sphi 0, %s45
      %s62 = sphi 0, %s46
      %s66 = sphi 0, %s66
      %s68 = sphi 0, %s66
      %s69 = sphi 0, %s68
      %s83 = sphi 0, %s69
      %s87 = sphi 0, %s87
      %s89 = sphi 0, %s87
      %s90 = sphi 0, %s89
      %s104 = sphi 0, %s90
      %s110 = sphi 0, %s112
      %s113 = sphi 0, %s110
      %s114 = sphi 0, %s113
      %s130 = sphi 0, %s114
      %s136 = sphi 0, %s138
      %s139 = sphi 0, %s136
      %s140 = sphi 0, %s139
      %s156 = sphi 0, %s140
      %s164 = sphi 0, %s166
      %s167 = sphi 0, %s164
      %s168 = sphi 0, %s167
      %s184 = sphi 0, %s168
    $region4: #{tpu_custom_call.1} parent=1 // loop_header_branch
      %23 = sbr.rel (%p21) target = $region8
    $region5: #{tpu_custom_call.1} parent=1 // loop_body
      %s25 = ssub.s32 %s20, 1
      %s26 = ssub.s32 %s20, 2
      %s33 = sadd.s32 1, %s28
      %p34 = scmp.ge.s32.totalorder %s33, 2
      %s35 = scalar_select %p34, 0, %s33
      %s36 = sadd.s32 1, %s27
      %s37 = scalar_select %p34, %s36, %s27
      %p38 = scmp.ge.s32.totalorder %s37, 2
      %s39 = scalar_select %p38, 0, %s37
      %s40 = ssub.s32 %s27, %s39
      %p41 = scmp.eq.s32.totalorder %s40, 0
      %s43 = sadd.s32 %s42, 1
      %s44 = scalar_select %p41, %s42, %s43
      %p47 = pneg %p41
      %p48 = scmp.eq.s32.totalorder %s20, 3
      %p49 = por %p47, %p48
      %p50 = scmp.ne.s32.totalorder %s42, %s45
      %p51 = scmp.eq.s32.totalorder %s20, 0
      %p52 = por %p50, %p51
      %p53 = scmp.ne.s32.totalorder %s42, %s45
      %p54 = scmp.eq.s32.totalorder %s25, 3
      %p55 = por %p53, %p54
      %p56 = scmp.ne.s32.totalorder %s45, %s46
      %p57 = scmp.eq.s32.totalorder %s25, 0
      %p58 = por %p56, %p57
      %p59 = scmp.ne.s32.totalorder %s45, %s46
      %p60 = scmp.eq.s32.totalorder %s26, 3
      %p61 = por %p59, %p60
      %p63 = scmp.ne.s32.totalorder %s46, %s62
      %p64 = scmp.eq.s32.totalorder %s26, 0
      %p65 = por %p63, %p64
      %s67 = sadd.s32 %s66, 1
      %p70 = scmp.eq.s32.totalorder %s20, 3
      %p71 = scmp.ne.s32.totalorder %s66, %s68
      %p72 = scmp.eq.s32.totalorder %s20, 0
      %p73 = por %p71, %p72
      %p74 = scmp.ne.s32.totalorder %s66, %s68
      %p75 = scmp.eq.s32.totalorder %s25, 3
      %p76 = por %p74, %p75
      %p77 = scmp.ne.s32.totalorder %s68, %s69
      %p78 = scmp.eq.s32.totalorder %s25, 0
      %p79 = por %p77, %p78
      %p80 = scmp.ne.s32.totalorder %s68, %s69
      %p81 = scmp.eq.s32.totalorder %s26, 3
      %p82 = por %p80, %p81
      %p84 = scmp.ne.s32.totalorder %s69, %s83
      %p85 = scmp.eq.s32.totalorder %s26, 0
      %p86 = por %p84, %p85
      %s88 = sadd.s32 %s87, 1
      %p91 = scmp.eq.s32.totalorder %s20, 3
      %p92 = scmp.ne.s32.totalorder %s87, %s89
      %p93 = scmp.eq.s32.totalorder %s20, 0
      %p94 = por %p92, %p93
      %p95 = scmp.ne.s32.totalorder %s87, %s89
      %p96 = scmp.eq.s32.totalorder %s25, 3
      %p97 = por %p95, %p96
      %p98 = scmp.ne.s32.totalorder %s89, %s90
      %p99 = scmp.eq.s32.totalorder %s25, 0
      %p100 = por %p98, %p99
      %p101 = scmp.ne.s32.totalorder %s89, %s90
      %p102 = scmp.eq.s32.totalorder %s26, 3
      %p103 = por %p101, %p102
      %p105 = scmp.ne.s32.totalorder %s90, %s104
      %p106 = scmp.eq.s32.totalorder %s26, 0
      %p107 = por %p105, %p106
      %s108 = ssub.s32 %s28, %s35
      %p109 = scmp.eq.s32.totalorder %s108, 0
      %s111 = sadd.s32 %s110, 1
      %s112 = scalar_select %p109, %s110, %s111
      %p115 = pneg %p109
      %p116 = scmp.eq.s32.totalorder %s20, 3
      %p117 = por %p115, %p116
      %p118 = scmp.ne.s32.totalorder %s110, %s113
      %p119 = scmp.eq.s32.totalorder %s20, 0
      %p120 = por %p118, %p119
      %p121 = scmp.ne.s32.totalorder %s110, %s113
      %p122 = scmp.eq.s32.totalorder %s25, 3
      %p123 = por %p121, %p122
      %p124 = scmp.ne.s32.totalorder %s113, %s114
      %p125 = scmp.eq.s32.totalorder %s25, 0
      %p126 = por %p124, %p125
      %p127 = scmp.ne.s32.totalorder %s113, %s114
      %p128 = scmp.eq.s32.totalorder %s26, 3
      %p129 = por %p127, %p128
      %p131 = scmp.ne.s32.totalorder %s114, %s130
      %p132 = scmp.eq.s32.totalorder %s26, 0
      %p133 = por %p131, %p132
      %s134 = ssub.s32 %s28, %s35
      %p135 = scmp.eq.s32.totalorder %s134, 0
      %s137 = sadd.s32 %s136, 1
      %s138 = scalar_select %p135, %s136, %s137
      %p141 = pneg %p135
      %p142 = scmp.eq.s32.totalorder %s20, 3
      %p143 = por %p141, %p142
      %p144 = scmp.ne.s32.totalorder %s136, %s139
      %p145 = scmp.eq.s32.totalorder %s20, 0
      %p146 = por %p144, %p145
      %p147 = scmp.ne.s32.totalorder %s136, %s139
      %p148 = scmp.eq.s32.totalorder %s25, 3
      %p149 = por %p147, %p148
      %p150 = scmp.ne.s32.totalorder %s139, %s140
      %p151 = scmp.eq.s32.totalorder %s25, 0
      %p152 = por %p150, %p151
      %p153 = scmp.ne.s32.totalorder %s139, %s140
      %p154 = scmp.eq.s32.totalorder %s26, 3
      %p155 = por %p153, %p154
      %p157 = scmp.ne.s32.totalorder %s140, %s156
      %p158 = scmp.eq.s32.totalorder %s26, 0
      %p159 = por %p157, %p158
      %s160 = ssub.s32 %s27, %s39
      %s161 = ssub.s32 %s28, %s35
      %s162 = sor.u32 %s160, %s161
      %p163 = scmp.eq.s32.totalorder %s162, 0
      %s165 = sadd.s32 %s164, 1
      %s166 = scalar_select %p163, %s164, %s165
      %p169 = pneg %p163
      %p170 = scmp.eq.s32.totalorder %s20, 3
      %p171 = por %p169, %p170
      %p172 = scmp.ne.s32.totalorder %s164, %s167
      %p173 = scmp.eq.s32.totalorder %s20, 0
      %p174 = por %p172, %p173
      %p175 = scmp.ne.s32.totalorder %s164, %s167
      %p176 = scmp.eq.s32.totalorder %s25, 3
      %p177 = por %p175, %p176
      %p178 = scmp.ne.s32.totalorder %s167, %s168
      %p179 = scmp.eq.s32.totalorder %s25, 0
      %p180 = por %p178, %p179
      %p181 = scmp.ne.s32.totalorder %s167, %s168
      %p182 = scmp.eq.s32.totalorder %s26, 3
      %p183 = por %p181, %p182
      %p185 = scmp.ne.s32.totalorder %s168, %s184
      %p186 = scmp.eq.s32.totalorder %s26, 0
      %p187 = por %p185, %p186
      %p188 = scmp.le.s32.totalorder 1, %s20
      %p189 = scmp.lt.s32.totalorder %s20, 5
      %p190 = pnand %p188, %p189
      %p191 = pneg %p190
      // Predicated region
      $region9: #{tpu_custom_call.1} parent=5 // pred_check
        _
      $region10: #{tpu_custom_call.1} parent=5 // pred_check_branch
        %193 = sbr.rel (%p190) target = $region12
      $region11: #{tpu_custom_call.1} parent=5 // pred_region
        %s194 = ssub.s32 %s20, 1
        // Predicated region
        $region13: #{tpu_custom_call.1} parent=11 // pred_check
          %p195 = pneg %p79
        $region14: #{tpu_custom_call.1} parent=11 // pred_check_branch
          %197 = sbr.rel (%p195) target = $region16
        $region15: #{tpu_custom_call.1} parent=11 // pred_region
          _
        $region16: #{tpu_custom_call.1} parent=11 // pred_fallthru
          _
        // Predicated region
        $region17: #{tpu_custom_call.1} parent=11 // pred_check
          %p198 = pneg %p100
        $region18: #{tpu_custom_call.1} parent=11 // pred_check_branch
          %200 = sbr.rel (%p198) target = $region20
        $region19: #{tpu_custom_call.1} parent=11 // pred_region
          _
        $region20: #{tpu_custom_call.1} parent=11 // pred_fallthru
          _
      $region12: #{tpu_custom_call.1} parent=5 // pred_fallthru
        _
      %p201 = scmp.lt.s32.totalorder %s20, 4
      // Predicated region
      $region21: #{tpu_custom_call.1} parent=5 // pred_check
        %p202 = pneg %p201
      $region22: #{tpu_custom_call.1} parent=5 // pred_check_branch
        %204 = sbr.rel (%p202) target = $region24
      $region23: #{tpu_custom_call.1} parent=5 // pred_region
        // Predicated region
        $region25: #{tpu_custom_call.1} parent=23 // pred_check
          %p205 = pneg %p52
        $region26: #{tpu_custom_call.1} parent=23 // pred_check_branch
          %207 = sbr.rel (%p205) target = $region28
        $region27: #{tpu_custom_call.1} parent=23 // pred_region
          %s208 = sand.u32 %s42, 1
          %s209 = scalar_lea.sflag [#allocation3], %s208
          %s210 = sand.u32 %s42, 1
          %s211 = smul.addr %s210, 8
          %s212 = scalar_lea.vmem [#allocation2], %s211
          %s214 = ssub.s32 128, 128
          %215 = vsyncadd %s209, %s214
          %s216 = smul.addr %s27, 128
          %s217 = scalar_lea.hbm %s0, %s216
          %s219 = sshll.u32 %s212, 4
          %s220 = int_to_ptr.vmem [resolvable:$true] %s219
          %222 = dma.hbm_to_vmem [thread:$0]  %s217, 128, %s220, %s209
        $region28: #{tpu_custom_call.1} parent=23 // pred_fallthru
          _
        // Predicated region
        $region29: #{tpu_custom_call.1} parent=23 // pred_check
          %p223 = pneg %p120
        $region30: #{tpu_custom_call.1} parent=23 // pred_check_branch
          %225 = sbr.rel (%p223) target = $region32
        $region31: #{tpu_custom_call.1} parent=23 // pred_region
          %s226 = sand.u32 %s110, 1
          %s227 = scalar_lea.sflag [#allocation6], %s226
          %s228 = sand.u32 %s110, 1
          %s229 = smul.addr %s228, 64
          %s230 = scalar_lea.vmem [#allocation5], %s229
          %s231 = smul.u32 4, %s28
          %s233 = ssub.s32 1024, 1024
          %234 = vsyncadd %s227, %s233
          %s235 = smul.addr %s231, 64
          %s236 = scalar_lea.hbm %s3, %s235
          %s237 = sshll.u32 %s230, 4
          %s238 = int_to_ptr.vmem [resolvable:$true] %s237
          %243 = dma.hbm_to_vmem [thread:$0]  %s236, 1024, %s238, %s227, 512, 256, 16
        $region32: #{tpu_custom_call.1} parent=23 // pred_fallthru
          _
        // Predicated region
        $region33: #{tpu_custom_call.1} parent=23 // pred_check
          %p244 = pneg %p146
        $region34: #{tpu_custom_call.1} parent=23 // pred_check_branch
          %246 = sbr.rel (%p244) target = $region36
        $region35: #{tpu_custom_call.1} parent=23 // pred_region
          %s247 = smul.u32 4, %s28
          %p248 = scmp.lt.s32.totalorder %s247, 7
          %s249 = scalar_select %p248, %s247, 7
          %s250 = scalar_lea.vmem %s4, %s249
          %s251 = smul.u32 4, %s28
        $region36: #{tpu_custom_call.1} parent=23 // pred_fallthru
          _
      $region24: #{tpu_custom_call.1} parent=5 // pred_fallthru
        _
      %p252 = scmp.le.s32.totalorder 1, %s20
      %p253 = scmp.lt.s32.totalorder %s20, 5
      %p254 = pnand %p252, %p253
      %p255 = pneg %p254
      // Predicated region
      $region37: #{tpu_custom_call.1} parent=5 // pred_check
        _
      $region38: #{tpu_custom_call.1} parent=5 // pred_check_branch
        %257 = sbr.rel (%p254) target = $region40
      $region39: #{tpu_custom_call.1} parent=5 // pred_region
        %s258 = ssub.s32 %s20, 1
        %s259 = sand.u32 %s45, 1
        %s260 = scalar_lea.sflag [#allocation3], %s259
        %s261 = sand.u32 %s45, 1
        %s262 = smul.addr %s261, 8
        %s263 = scalar_lea.vmem [#allocation2], %s262
        // Predicated region
        $region41: #{tpu_custom_call.1} parent=39 // pred_check
          %p264 = pneg %p58
        $region42: #{tpu_custom_call.1} parent=39 // pred_check_branch
          %266 = sbr.rel (%p264) target = $region44
        $region43: #{tpu_custom_call.1} parent=39 // pred_region
          %267 = dma.done %s260, 128
        $region44: #{tpu_custom_call.1} parent=39 // pred_fallthru
          _
        %s268 = sand.u32 %s113, 1
        %s269 = scalar_lea.sflag [#allocation6], %s268
        %s270 = sand.u32 %s113, 1
        %s271 = smul.addr %s270, 64
        %s272 = scalar_lea.vmem [#allocation5], %s271
        // Predicated region
        $region45: #{tpu_custom_call.1} parent=39 // pred_check
          %p273 = pneg %p126
        $region46: #{tpu_custom_call.1} parent=39 // pred_check_branch
          %275 = sbr.rel (%p273) target = $region48
        $region47: #{tpu_custom_call.1} parent=39 // pred_region
          %276 = dma.done %s269, 1024
        $region48: #{tpu_custom_call.1} parent=39 // pred_fallthru
          _
        %s277 = sand.u32 %s45, 1
        %s278 = scalar_lea.sflag [#allocation3], %s277
        %s279 = sand.u32 %s45, 1
        %s280 = smul.addr %s279, 8
        %s281 = scalar_lea.vmem [#allocation2], %s280
        %p282 = pneg %p58
        %p283 = pneg %p55
        %p284 = pneg %p79
        %p285 = pneg %p76
        %p286 = pneg %p100
        %p287 = pneg %p97
        %s288 = sand.u32 %s113, 1
        %s289 = scalar_lea.sflag [#allocation6], %s288
        %s290 = sand.u32 %s113, 1
        %s291 = smul.addr %s290, 64
        %s292 = scalar_lea.vmem [#allocation5], %s291
        %p293 = pneg %p126
        %p294 = pneg %p123
        %s295 = smul.u32 4, %s30
        %p296 = scmp.lt.s32.totalorder %s295, 7
        %s297 = scalar_select %p296, %s295, 7
        %s298 = scalar_lea.vmem %s4, %s297
        %p299 = pneg %p152
        %p300 = pneg %p149
        %p301 = pneg %p180
        %p302 = pneg %p177
        %s303 = sand.u32 %s167, 1
        %s304 = scalar_lea.sflag [#allocation4], %s303
        %s305 = sand.u32 %s167, 1
        %s306 = smul.addr %s305, 32
        %s307 = scalar_lea.vmem [#allocation7], %s306
        %s308 = smul.u32 4, %s30
        %s309 = smul.u32 4, %s30
        %p310 = scmp.lt.s32.totalorder %s309, 7
        %s311 = scalar_select %p310, %s309, 7
        %s312 = scalar_lea.vmem %s4, %s311
        %s313 = smul.u32 4, %s30
        %s314 = smul.u32 4, %s30
        %v316 = vld [vmem:[%s263] sm:$0xff]
        %vm317 = vcmask 261120
        %v318 = vsel %vm317, %v316, 0.0
        %319 = vadd.xlane.f32.xlu0 %v318
        %v320 = vpop.xlane.xlu0 %319
        %v321 = vrcp.pop 32.0
        %v322 = vmul.f32 %v320, %v321
        %v323 = vsub.f32 %v316, %v322
        %v324 = vmul.f32 %v323, %v323
        %v325 = vsel %vm317, %v324, 0.0
        %326 = vadd.xlane.f32.xlu0 %v325
        %v327 = vpop.xlane.xlu0 %326
        %v328 = vmul.f32 %v327, %v321
        %v329 = vadd.f32 %v328, 1e-05
        %v330 = vrsqrt.pop %v329
        %v331 = vmul.f32 %v323, %v330
        %v332 = vld [vmem:[%s1] sm:$0x1]
        %v334 = vlaneseq
        %v335 = vshrl.u32 %v334, 7
        %v336 = vsub.s32 0, %v335
        %v337 = vrot.slane %v332, %v336
        %v339 = vmul.f32 %v331, %v337
        %v340 = vld [vmem:[%s2] sm:$0x1]
        %v342 = vlaneseq
        %v343 = vshrl.u32 %v342, 7
        %v344 = vsub.s32 0, %v343
        %v345 = vrot.slane %v340, %v344
        %v347 = vadd.f32 %v339, %v345
        %v348 = vpack.c.bf16 %v347, %v347
        %v349 = vld [vmem:[%s272] sm:$0xff]
        %v350 = vld [vmem:[%s272 + $0x8] sm:$0xff]
        %v351 = vld [vmem:[%s272 + $0x10] sm:$0xff]
        %v352 = vld [vmem:[%s272 + $0x18] sm:$0xff]
        %v353 = vld [vmem:[%s272 + $0x20] sm:$0xff]
        %v354 = vld [vmem:[%s272 + $0x28] sm:$0xff]
        %v355 = vld [vmem:[%s272 + $0x30] sm:$0xff]
        %v356 = vld [vmem:[%s272 + $0x38] sm:$0xff]
        %v357 = vld [vmem:[%s312] sm:$0xf]
        %v359 = vlaneseq
        %v360 = vshrl.u32 %v359, 7
        %v361 = vsub.s32 0, %v360
        %v362 = vrot.slane %v357, %v361
        %v363 = vlaneseq
        %v364 = vshrl.u32 %v363, 7
        %v365 = vsub.s32 1, %v364
        %v366 = vrot.slane %v357, %v365
        %v367 = vlaneseq
        %v368 = vshrl.u32 %v367, 7
        %v369 = vsub.s32 2, %v368
        %v370 = vrot.slane %v357, %v369
        %v371 = vlaneseq
        %v372 = vshrl.u32 %v371, 7
        %v373 = vsub.s32 3, %v372
        %v374 = vrot.slane %v357, %v373
        %v387 = vunpack.c.l.b16 %v349
        %v388 = vunpack.c.h.b16 %v349
        %v389 = vunpack.c.l.b16 %v350
        %v390 = vunpack.c.h.b16 %v350
        %v391 = vunpack.c.l.b16 %v351
        %v392 = vunpack.c.h.b16 %v351
        %v393 = vunpack.c.l.b16 %v352
        %v394 = vunpack.c.h.b16 %v352
        %v395 = vunpack.c.l.b16 %v353
        %v396 = vunpack.c.h.b16 %v353
        %v397 = vunpack.c.l.b16 %v354
        %v398 = vunpack.c.h.b16 %v354
        %v399 = vunpack.c.l.b16 %v355
        %v400 = vunpack.c.h.b16 %v355
        %v401 = vunpack.c.l.b16 %v356
        %v402 = vunpack.c.h.b16 %v356
        %v403 = vpack.c.b16 %v391, %v387
        %v404 = vpack.c.b16 %v392, %v388
        %v405 = vpack.c.b16 %v393, %v389
        %v406 = vpack.c.b16 %v394, %v390
        %v407 = vpack.c.b16 %v399, %v395
        %v408 = vpack.c.b16 %v400, %v396
        %v409 = vpack.c.b16 %v401, %v397
        %v410 = vpack.c.b16 %v402, %v398
        %v420 = vsel %vm317, %v348, 0
        %422 = vmatprep.subr.bf16.mxu0 %v404
        %423 = vmatpush1.bf16.msra.mxu0 %v403
        %424 = vmatprep.subr.bf16.mxu0 %v408
        %425 = vmatpush1.bf16.msra.mxu0 %v407
        %426 = vmatprep.subr.bf16.mxu0 0
        %427 = vmatpush1.bf16.msra.mxu0 0
        %428 = vmatprep.subr.bf16.mxu0 0
        %429 = vmatpush1.bf16.msra.mxu0 0
        %430 = vmatprep.subr.bf16.mxu0 0
        %431 = vmatpush1.bf16.msra.mxu0 0
        %432 = vmatprep.subr.bf16.mxu0 0
        %433 = vmatpush1.bf16.msra.mxu0 0
        %434 = vmatprep.subr.bf16.mxu0 0
        %435 = vmatpush1.bf16.msra.mxu0 0
        %436 = vmatprep.subr.bf16.mxu0 0
        %437 = vmatpush1.bf16.msra.mxu0 0
        %438 = vmatprep.subr.bf16.mxu0 0
        %439 = vmatpush1.bf16.msra.mxu0 0
        %440 = vmatprep.subr.bf16.mxu0 0
        %441 = vmatpush1.bf16.msra.mxu0 0
        %442 = vmatprep.subr.bf16.mxu0 0
        %443 = vmatpush1.bf16.msra.mxu0 0
        %444 = vmatprep.subr.bf16.mxu0 0
        %445 = vmatpush1.bf16.msra.mxu0 0
        %446 = vmatprep.subr.bf16.mxu0 0
        %447 = vmatpush1.bf16.msra.mxu0 0
        %448 = vmatprep.subr.bf16.mxu0 0
        %449 = vmatpush1.bf16.msra.mxu0 0
        %450 = vmatprep.subr.bf16.mxu0 0
        %451 = vmatpush1.bf16.msra.mxu0 0
        %452 = vmatprep.subr.bf16.mxu0 0
        %453 = vmatpush1.bf16.msra.mxu0 0
        %454 = vmatprep.mubr.bf16.mxu0 0
        %455 = vmatmul.mubr.bf16.gmra.mrb[0].mxu0 %v420
        %v456 = vpop.f32.mrb[0].mxu0
        %v457 = vadd.f32 %v362, %v456
        %v458 = vpop.f32.mrb[0].mxu0
        %v459 = vadd.f32 %v366, %v458
        %v460 = vpop.f32.mrb[0].mxu0
        %v461 = vpop.f32.mrb[0].mxu0
        %462 = vdwg.mxu0
        %463 = vmatprep.subr.bf16.mxu0 %v406
        %464 = vmatpush1.bf16.msra.mxu0 %v405
        %465 = vmatprep.subr.bf16.mxu0 %v410
        %466 = vmatpush1.bf16.msra.mxu0 %v409
        %467 = vmatprep.subr.bf16.mxu0 0
        %468 = vmatpush1.bf16.msra.mxu0 0
        %469 = vmatprep.subr.bf16.mxu0 0
        %470 = vmatpush1.bf16.msra.mxu0 0
        %471 = vmatprep.subr.bf16.mxu0 0
        %472 = vmatpush1.bf16.msra.mxu0 0
        %473 = vmatprep.subr.bf16.mxu0 0
        %474 = vmatpush1.bf16.msra.mxu0 0
        %475 = vmatprep.subr.bf16.mxu0 0
        %476 = vmatpush1.bf16.msra.mxu0 0
        %477 = vmatprep.subr.bf16.mxu0 0
        %478 = vmatpush1.bf16.msra.mxu0 0
        %479 = vmatprep.subr.bf16.mxu0 0
        %480 = vmatpush1.bf16.msra.mxu0 0
        %481 = vmatprep.subr.bf16.mxu0 0
        %482 = vmatpush1.bf16.msra.mxu0 0
        %483 = vmatprep.subr.bf16.mxu0 0
        %484 = vmatpush1.bf16.msra.mxu0 0
        %485 = vmatprep.subr.bf16.mxu0 0
        %486 = vmatpush1.bf16.msra.mxu0 0
        %487 = vmatprep.subr.bf16.mxu0 0
        %488 = vmatpush1.bf16.msra.mxu0 0
        %489 = vmatprep.subr.bf16.mxu0 0
        %490 = vmatpush1.bf16.msra.mxu0 0
        %491 = vmatprep.subr.bf16.mxu0 0
        %492 = vmatpush1.bf16.msra.mxu0 0
        %493 = vmatprep.subr.bf16.mxu0 0
        %494 = vmatpush1.bf16.msra.mxu0 0
        %495 = vmatprep.mubr.bf16.mxu0 0
        %496 = vmatmul.mubr.bf16.gmra.mrb[0].mxu0 %v420
        %v497 = vpop.f32.mrb[0].mxu0
        %v498 = vadd.f32 %v370, %v497
        %v499 = vpop.f32.mrb[0].mxu0
        %v500 = vadd.f32 %v374, %v499
        %v501 = vpop.f32.mrb[0].mxu0
        %v502 = vpop.f32.mrb[0].mxu0
        %503 = vdwg.mxu0
        %504 = vst [vmem:[%s307] sm:$0xff] %v457
        %505 = vst [vmem:[%s307 + $0x8] sm:$0xff] %v459
        %506 = vst [vmem:[%s307 + $0x10] sm:$0xff] %v498
        %507 = vst [vmem:[%s307 + $0x18] sm:$0xff] %v500
        %s508 = sand.u32 %s167, 1
        %s509 = scalar_lea.sflag [#allocation4], %s508
        %s510 = sand.u32 %s167, 1
        %s511 = smul.addr %s510, 32
        %s512 = scalar_lea.vmem [#allocation7], %s511
        // Predicated region
        $region49: #{tpu_custom_call.1} parent=39 // pred_check
          %p513 = pneg %p177
        $region50: #{tpu_custom_call.1} parent=39 // pred_check_branch
          %515 = sbr.rel (%p513) target = $region52
        $region51: #{tpu_custom_call.1} parent=39 // pred_region
          %s516 = smul.u32 4, %s30
          %s518 = ssub.s32 512, 512
          %519 = vsyncadd %s509, %s518
          %s520 = smul.addr %s29, 8
          %s521 = sadd.s32 %s516, %s520
          %s522 = smul.addr %s521, 128
          %s523 = scalar_lea.hbm %s5, %s522
          %s525 = sshll.u32 %s512, 4
          %s526 = int_to_ptr.vmem [resolvable:$true] %s525
          %528 = dma.vmem_to_hbm [thread:$0]  %s526, 512, %s523, %s509
        $region52: #{tpu_custom_call.1} parent=39 // pred_fallthru
          _
      $region40: #{tpu_custom_call.1} parent=5 // pred_fallthru
        _
      %p529 = scmp.le.s32.totalorder 2, %s20
      // Predicated region
      $region53: #{tpu_custom_call.1} parent=5 // pred_check
        %p530 = pneg %p529
      $region54: #{tpu_custom_call.1} parent=5 // pred_check_branch
        %532 = sbr.rel (%p530) target = $region56
      $region55: #{tpu_custom_call.1} parent=5 // pred_region
        %s533 = ssub.s32 %s20, 2
        // Predicated region
        $region57: #{tpu_custom_call.1} parent=55 // pred_check
          %p534 = pneg %p183
        $region58: #{tpu_custom_call.1} parent=55 // pred_check_branch
          %536 = sbr.rel (%p534) target = $region60
        $region59: #{tpu_custom_call.1} parent=55 // pred_region
          %s537 = sand.u32 %s168, 1
          %s538 = scalar_lea.sflag [#allocation4], %s537
          %s539 = sand.u32 %s168, 1
          %s540 = smul.addr %s539, 32
          %s541 = scalar_lea.vmem [#allocation7], %s540
          %542 = dma.done %s538, 512
        $region60: #{tpu_custom_call.1} parent=55 // pred_fallthru
          _
      $region56: #{tpu_custom_call.1} parent=5 // pred_fallthru
        _
    $region6: #{tpu_custom_call.1} parent=1 // loop_footer
      %s24 = sadd.s32 1, %s20
    $region7: #{tpu_custom_call.1} parent=1 // loop_footer_branch
      %19 = sbr.rel target = $region3
    $region8: #{tpu_custom_call.1} parent=1 // loop_exit
      _
    %543 = vsyncpa [#allocation3], 1
    %s544 = scalar_lea.sflag [#allocation3], 1
    %545 = vsyncpa %s544, 1
    %546 = vsyncpa [#allocation6], 1
    %s547 = scalar_lea.sflag [#allocation6], 1
    %548 = vsyncpa %s547, 1
    %549 = vsyncpa [#allocation4], 1
    %s550 = scalar_lea.sflag [#allocation4], 1
    %551 = vsyncpa %s550, 1

</llo_original>
